<compile_context>
chip_gen: v5e
topology: v5e:2x2
jax: 0.10.0
libtpu: 0.0.40
codegen_flags: <defaults>
</compile_context>

<pallas_src>
import functools

import jax
import jax.numpy as jnp
from jax.experimental import pallas as pl
from jax.experimental.pallas import tpu as pltpu


# ------------------------------ small helpers ------------------------------ #
def _rup(n, m=128):
    return ((n + m - 1) // m) * m


def _pad2d(x, rows, cols, dtype=None):
    out = jnp.pad(x, ((0, rows - x.shape[0]), (0, cols - x.shape[1])))
    return out if dtype is None else out.astype(dtype)


_VMEM_TILE_BUDGET = 8 * 1024 * 1024  # bytes budgeted for the double-buffered enc+eproj tiles


def _choose_tiles(B, S, EH2p, Hp):
    """Pick (Bp, bb, Sp, St): batch padded to 16 (bf16 sublane packing), batch
    block = full small batch / 256 for big ones, S tile sized to a VMEM budget."""
    Bp = _rup(max(B, 1), 16)
    bb = Bp if Bp <= 256 else 256
    Bp = _rup(Bp, bb)
    per_s_row = bb * (EH2p + Hp) * 2 * 2          # enc + eproj tiles, bf16, double-buffered
    st_budget = (_VMEM_TILE_BUDGET // per_s_row) // 8 * 8
    st = max(8, min(_rup(S, 8), st_budget))
    Sp = _rup(S, st)
    return Bp, bb, Sp, st


def _choose_op_tile(Op):
    if Op <= 1024:
        return Op
    for cand in (1024, 512, 256):
        if Op % cand == 0:
            return cand
    return 128                                     # Op is always a multiple of 128


# ------------------------------ Pallas kernels ------------------------------ #
def _enc_proj_kernel(enc_ref, wa_e_ref, ba_ref, eproj_ref):
    """Hoisted attention-key projection on a batch-major tile:
    eproj[b,s,:] = enc[b,s,:] @ Wa_e + b_a   (stored in bf16)."""
    bb, st, EH2p = enc_ref.shape
    Hp = wa_e_ref.shape[1]
    enc2 = enc_ref[...].reshape(bb * st, EH2p)                       # bf16, M = bb*st
    proj = jnp.dot(enc2, wa_e_ref[...],
                   preferred_element_type=jnp.float32) + ba_ref[...]
    eproj_ref[...] = proj.reshape(bb, st, Hp).astype(jnp.bfloat16)


def _attn_gru_kernel(
    s_len,                                                   # static: true source length
    emb_ref, hid_ref, enc_ref, eproj_ref,                    # [bb,Ep],[bb,Hp],[bb,St,2EHp],[bb,St,Hp]
    wa_h_ref, v_ref,                                         # [Hp,Hp] bf16, [1,Hp] f32
    w_ih_e_ref, w_ih_w_ref, w_hh_ref, b_ih_ref, b_hh_ref,    # GRU (gate order r|z|n, per-gate padded)
    hid_out_ref, wgt_out_ref,                                # [bb,Hp] f32, [bb,2EHp] bf16
    hproj_scr, m_scr, l_scr, acc_scr,                        # online-softmax carry (f32 scratch)
):
    f32, bf16 = jnp.float32, jnp.bfloat16
    s_idx = pl.program_id(1)
    st = enc_ref.shape[1]
    Hp = hid_ref.shape[1]

    @pl.when(s_idx == 0)
    def _():
        hproj_scr[...] = jnp.dot(hid_ref[...].astype(bf16), wa_h_ref[...],
                                 preferred_element_type=f32)
        m_scr[...] = jnp.full_like(m_scr, -1e30)
        l_scr[...] = jnp.zeros_like(l_scr)
        acc_scr[...] = jnp.zeros_like(acc_scr)

    # ---- Bahdanau scores for this S tile (tanh / dot-with-v kept in f32) ----
    enc = enc_ref[...]                                               # [bb,St,2EHp] bf16
    energy = jnp.tanh(eproj_ref[...].astype(f32) + hproj_scr[...][:, None, :])
    scores = jnp.sum(energy * v_ref[...], axis=-1)                   # [bb, St] f32
    pos = jax.lax.broadcasted_iota(jnp.int32, scores.shape, 1) + s_idx * st
    scores = jnp.where(pos < s_len, scores, -1e30)                   # mask padded S rows

    # ---- online softmax + context accumulation (flash-style) ----
    m_prev = m_scr[...]
    m_new = jnp.maximum(m_prev, jnp.max(scores, axis=-1, keepdims=True))
    alpha = jnp.exp(m_prev - m_new)
    p = jnp.exp(scores - m_new)                                      # [bb, St]
    l_scr[...] = alpha * l_scr[...] + jnp.sum(p, axis=-1, keepdims=True)
    acc_scr[...] = alpha * acc_scr[...] + jnp.sum(p[:, :, None] * enc.astype(f32), axis=1)
    m_scr[...] = m_new

    # ---- final S tile: normalize context, run the GRU cell ----
    @pl.when(s_idx == pl.num_programs(1) - 1)
    def _():
        weighted = acc_scr[...] / l_scr[...]                         # [bb, 2EHp] f32
        wgt_b = weighted.astype(bf16)
        emb_b = emb_ref[...].astype(bf16)
        hid = hid_ref[...]
        gi = (jnp.dot(emb_b, w_ih_e_ref[...], preferred_element_type=f32)
              + jnp.dot(wgt_b, w_ih_w_ref[...], preferred_element_type=f32)
              + b_ih_ref[...])                                       # [bb, 3Hp]
        gh = jnp.dot(hid.astype(bf16), w_hh_ref[...], preferred_element_type=f32) + b_hh_ref[...]
        r = jax.nn.sigmoid(gi[:, 0:Hp] + gh[:, 0:Hp])
        z = jax.nn.sigmoid(gi[:, Hp:2 * Hp] + gh[:, Hp:2 * Hp])
        n = jnp.tanh(gi[:, 2 * Hp:3 * Hp] + r * gh[:, 2 * Hp:3 * Hp])
        h_new = (1.0 - z) * n + z * hid                              # [bb, Hp]
        # (output == hidden for a 1-layer / 1-step GRU, matching the torch assert)
        hid_out_ref[...] = h_new
        wgt_out_ref[...] = wgt_b


def _fc_out_kernel(hid_ref, wgt_ref, emb_ref,
                   fc_w_h_ref, fc_w_w_ref, fc_w_e_ref, fc_b_ref, pred_ref):
    """prediction = fc_out([output ; weighted ; embedded]), tiled over Op."""
    f32, bf16 = jnp.float32, jnp.bfloat16
    pred_ref[...] = (
        jnp.dot(hid_ref[...].astype(bf16), fc_w_h_ref[...], preferred_element_type=f32)
        + jnp.dot(wgt_ref[...], fc_w_w_ref[...], preferred_element_type=f32)
        + jnp.dot(emb_ref[...].astype(bf16), fc_w_e_ref[...], preferred_element_type=f32)
        + fc_b_ref[...])


# --------------------------------- wrappers --------------------------------- #
def precompute_encoder_context(prep, encoder_outputs):
    """Once per source sequence (constant across decode steps): re-layout the
    encoder outputs batch-major, pad/cast to bf16, and hoist the Wa_e projection."""
    shp = prep["shapes"]
    S, B, EH2 = encoder_outputs.shape
    EH2p, Hp = shp["EH2p"], shp["Hp"]
    Bp, bb, Sp, st = _choose_tiles(B, S, EH2p, Hp)

    enc_bm = jnp.transpose(encoder_outputs, (1, 0, 2))               # [B, S, 2EH]
    enc_bm = jnp.pad(enc_bm, ((0, Bp - B), (0, Sp - S), (0, EH2p - EH2))).astype(jnp.bfloat16)

    eproj = pl.pallas_call(
        _enc_proj_kernel,
        out_shape=jax.ShapeDtypeStruct((Bp, Sp, Hp), jnp.bfloat16),
        grid=(Bp // bb, Sp // st),
        in_specs=[
            pl.BlockSpec((bb, st, EH2p), lambda i, s: (i, s, 0)),
            pl.BlockSpec((EH2p, Hp), lambda i, s: (0, 0)),
            pl.BlockSpec((1, Hp), lambda i, s: (0, 0)),
        ],
        out_specs=pl.BlockSpec((bb, st, Hp), lambda i, s: (i, s, 0)),
        compiler_params=pltpu.CompilerParams(
            dimension_semantics=("parallel", "parallel")),
    )(enc_bm, prep["wa_e"], prep["ba"])

    return {"enc": enc_bm, "eproj": eproj,
            "Bp": Bp, "bb": bb, "Sp": Sp, "st": st, "S": S}


def decoder_attention_step(prep, ctx, input_ids, hidden):
    """One decode step == DecoderAttention.forward (given a precomputed context)."""
    shp = prep["shapes"]
    B = input_ids.shape[0]
    H, O = shp["H"], shp["O"]
    Ep, Hp, EH2p, Op = shp["Ep"], shp["Hp"], shp["EH2p"], shp["Op"]
    Bp, bb, Sp, st, S = ctx["Bp"], ctx["bb"], ctx["Sp"], ctx["st"], ctx["S"]

    # Embedding lookup + dropout (identity at inference) stay as JAX glue.
    emb = jnp.take(prep["embedding"], input_ids, axis=0)             # [B, E] f32
    emb_p = _pad2d(emb, Bp, Ep)
    hid_p = _pad2d(hidden, Bp, Hp)

    def const2(shape):
        return pl.BlockSpec(shape, lambda i, s: (0, 0))

    # ---- Kernel 2: attention (online softmax over S tiles) + context + GRU ----
    hid_new_p, wgt_p = pl.pallas_call(
        functools.partial(_attn_gru_kernel, S),
        out_shape=(jax.ShapeDtypeStruct((Bp, Hp), jnp.float32),
                   jax.ShapeDtypeStruct((Bp, EH2p), jnp.bfloat16)),
        grid=(Bp // bb, Sp // st),
        in_specs=[
            pl.BlockSpec((bb, Ep), lambda i, s: (i, 0)),             # embedded
            pl.BlockSpec((bb, Hp), lambda i, s: (i, 0)),             # hidden
            pl.BlockSpec((bb, st, EH2p), lambda i, s: (i, s, 0)),    # encoder outputs (batch-major)
            pl.BlockSpec((bb, st, Hp), lambda i, s: (i, s, 0)),      # hoisted projection (bf16)
            const2((Hp, Hp)),        # wa_h
            const2((1, Hp)),         # v
            const2((Ep, 3 * Hp)),    # w_ih (embedded rows)
            const2((EH2p, 3 * Hp)),  # w_ih (weighted rows)
            const2((Hp, 3 * Hp)),    # w_hh
            const2((1, 3 * Hp)),     # b_ih
            const2((1, 3 * Hp)),     # b_hh
        ],
        out_specs=(pl.BlockSpec((bb, Hp), lambda i, s: (i, 0)),
                   pl.BlockSpec((bb, EH2p), lambda i, s: (i, 0))),
        scratch_shapes=[
            pltpu.VMEM((bb, Hp), jnp.float32),     # hproj = hidden @ Wa_h
            pltpu.VMEM((bb, 1), jnp.float32),      # running max
            pltpu.VMEM((bb, 1), jnp.float32),      # running denominator
            pltpu.VMEM((bb, EH2p), jnp.float32),   # running weighted sum
        ],
        compiler_params=pltpu.CompilerParams(
            dimension_semantics=("parallel", "arbitrary")),
    )(emb_p, hid_p, ctx["enc"], ctx["eproj"],
      prep["wa_h"], prep["v"],
      prep["w_ih_e"], prep["w_ih_w"], prep["w_hh"], prep["b_ih"], prep["b_hh"])

    # ---- Kernel 3: fc_out, tiled over Op (vocab), Op outer so weight tiles DMA once ----
    op_t = _choose_op_tile(Op)
    pred_p = pl.pallas_call(
        _fc_out_kernel,
        out_shape=jax.ShapeDtypeStruct((Bp, Op), jnp.float32),
        grid=(Op // op_t, Bp // bb),
        in_specs=[
            pl.BlockSpec((bb, Hp), lambda j, i: (i, 0)),             # new hidden (= GRU output)
            pl.BlockSpec((bb, EH2p), lambda j, i: (i, 0)),           # weighted context (bf16)
            pl.BlockSpec((bb, Ep), lambda j, i: (i, 0)),             # embedded
            pl.BlockSpec((Hp, op_t), lambda j, i: (0, j)),           # fc_out (output rows)
            pl.BlockSpec((EH2p, op_t), lambda j, i: (0, j)),         # fc_out (weighted rows)
            pl.BlockSpec((Ep, op_t), lambda j, i: (0, j)),           # fc_out (embedded rows)
            pl.BlockSpec((1, op_t), lambda j, i: (0, j)),            # fc_b
        ],
        out_specs=pl.BlockSpec((bb, op_t), lambda j, i: (i, j)),
        compiler_params=pltpu.CompilerParams(
            dimension_semantics=("parallel", "parallel")),
    )(hid_new_p, wgt_p, emb_p,
      prep["fc_w_h"], prep["fc_w_w"], prep["fc_w_e"], prep["fc_b"])

    return pred_p[:B, :O], hid_new_p[:B, :H]


def decoder_attention(prep, input_ids, hidden, encoder_outputs):
    """Matches DecoderAttention.forward. In an autoregressive loop, call
    precompute_encoder_context once and decoder_attention_step per token."""
    ctx = precompute_encoder_context(prep, encoder_outputs)
    return decoder_attention_step(prep, ctx, input_ids, hidden)


# ---------------------- parameter init / kernel packing --------------------- #
def make_params(key, n_labels, E, EH, H, O):
    """f32 params in torch-equivalent layout (weights pre-transposed to [in,out])."""
    ks = jax.random.split(key, 11)
    EH2 = 2 * EH

    def u(k, shape, fan_in):
        b = 1.0 / jnp.sqrt(jnp.float32(fan_in))
        return jax.random.uniform(k, shape, jnp.float32, -b, b)

    return {
        "embedding": jax.random.normal(ks[0], (n_labels, E), jnp.float32),
        # attention.attn: Linear(EH2+H -> H), split by the cat order [hidden; enc]
        "wa_h": u(ks[1], (H, H), EH2 + H),
        "wa_e": u(ks[2], (EH2, H), EH2 + H),
        "ba":   u(ks[3], (1, H), EH2 + H),
        # attention.v: Linear(H -> 1, bias=False), kept as a [1,H] row vector
        "v":    u(ks[4], (1, H), H),
        # GRU (input E+EH2, hidden H), stored transposed [in, 3H], gate order r|z|n
        "w_ih": u(ks[5], (E + EH2, 3 * H), H),
        "w_hh": u(ks[6], (H, 3 * H), H),
        "b_ih": u(ks[7], (1, 3 * H), H),
        "b_hh": u(ks[8], (1, 3 * H), H),
        # fc_out: Linear(H+EH2+E -> O), transposed
        "fc_w": u(ks[9], (H + EH2 + E, O), EH2 + H + E),
        "fc_b": u(ks[10], (1, O), EH2 + H + E),
    }


def prepare_params(p):
    """Split / pad / cast once (offline) into the kernel-ready layout:
    lane dims padded to 128, MXU weights in bf16, concatenated mats split."""
    E = p["embedding"].shape[1]
    H = p["wa_h"].shape[0]
    EH2 = p["wa_e"].shape[0]
    O = p["fc_b"].shape[1]
    Ep, Hp, EH2p, Op = _rup(E), _rup(H), _rup(EH2), _rup(O)
    bf16, f32 = jnp.bfloat16, jnp.float32

    def pad_gate_w(w, rows_pad):   # [rows, 3H] -> [rows_pad, 3*Hp], gate order r|z|n kept
        return jnp.concatenate(
            [_pad2d(w[:, g * H:(g + 1) * H], rows_pad, Hp, bf16) for g in range(3)], axis=1)

    def pad_gate_b(b):             # [1, 3H] -> [1, 3*Hp], f32
        return jnp.concatenate(
            [_pad2d(b[:, g * H:(g + 1) * H], 1, Hp, f32) for g in range(3)], axis=1)

    return {
        "embedding": p["embedding"],                       # gather stays f32, JAX-side
        "wa_h": _pad2d(p["wa_h"], Hp, Hp, bf16),
        "wa_e": _pad2d(p["wa_e"], EH2p, Hp, bf16),
        "ba":   _pad2d(p["ba"], 1, Hp, f32),
        "v":    _pad2d(p["v"], 1, Hp, f32),
        # GRU input weights split by the torch.cat((embedded, weighted)) row order
        "w_ih_e": pad_gate_w(p["w_ih"][:E], Ep),
        "w_ih_w": pad_gate_w(p["w_ih"][E:], EH2p),
        "w_hh":   pad_gate_w(p["w_hh"], Hp),
        "b_ih":   pad_gate_b(p["b_ih"]),
        "b_hh":   pad_gate_b(p["b_hh"]),
        # fc_out split by the torch.cat((output, weighted, embedded)) row order
        "fc_w_h": _pad2d(p["fc_w"][:H], Hp, Op, bf16),
        "fc_w_w": _pad2d(p["fc_w"][H:H + EH2], EH2p, Op, bf16),
        "fc_w_e": _pad2d(p["fc_w"][H + EH2:], Ep, Op, bf16),
        "fc_b":   _pad2d(p["fc_b"], 1, Op, f32),
        "shapes": {"E": E, "EH2": EH2, "H": H, "O": O,
                   "Ep": Ep, "EH2p": EH2p, "Hp": Hp, "Op": Op},
    }


# ----------------------------- pure-JAX reference --------------------------- #
def reference(p, input_ids, hidden, encoder_outputs, mxu_dtype=None):
    """mxu_dtype=None reproduces the exact f32 torch semantics; mxu_dtype=bf16
    mirrors the kernel's precision policy (bf16 MXU operands, bf16-stored eproj
    and context, f32 accumulation and nonlinear math)."""
    c = (lambda x: x) if mxu_dtype is None else (lambda x: x.astype(mxu_dtype))
    f32 = jnp.float32
    emb = jnp.take(p["embedding"], input_ids, axis=0)                   # [B, E]
    enc = encoder_outputs                                               # [S, B, 2EH]
    if mxu_dtype is not None:
        enc = enc.astype(mxu_dtype)                                     # kernel stores enc in bf16
    S, B, EH2 = enc.shape
    H = hidden.shape[1]
    E = emb.shape[1]

    eproj = jnp.dot(c(enc.reshape(S * B, EH2)), c(p["wa_e"]),
                    preferred_element_type=f32).reshape(S, B, H) + p["ba"]
    if mxu_dtype is not None:
        eproj = eproj.astype(mxu_dtype)                                 # kernel stores eproj in bf16
    hproj = jnp.dot(c(hidden), c(p["wa_h"]), preferred_element_type=f32)
    energy = jnp.tanh(eproj.astype(f32) + hproj[None, :, :])
    scores = jnp.sum(energy * p["v"], axis=-1)                          # [S, B]
    a = jax.nn.softmax(scores, axis=0)                                  # softmax over src len
    weighted = jnp.sum(a[:, :, None] * enc.astype(f32), axis=0)         # [B, 2EH]

    gi = (jnp.dot(c(emb), c(p["w_ih"][:E]), preferred_element_type=f32)
          + jnp.dot(c(weighted), c(p["w_ih"][E:]), preferred_element_type=f32)
          + p["b_ih"])
    gh = jnp.dot(c(hidden), c(p["w_hh"]), preferred_element_type=f32) + p["b_hh"]
    r = jax.nn.sigmoid(gi[:, :H] + gh[:, :H])
    z = jax.nn.sigmoid(gi[:, H:2 * H] + gh[:, H:2 * H])
    n = jnp.tanh(gi[:, 2 * H:] + r * gh[:, 2 * H:])
    h_new = (1.0 - z) * n + z * hidden

    pred = (jnp.dot(c(h_new), c(p["fc_w"][:H]), preferred_element_type=f32)
            + jnp.dot(c(weighted), c(p["fc_w"][H:H + EH2]), preferred_element_type=f32)
            + jnp.dot(c(emb), c(p["fc_w"][H + EH2:]), preferred_element_type=f32)
            + p["fc_b"])
    return pred, h_new


if __name__ == "__main__":
    key = jax.random.PRNGKey(0)
    B, S = 2, 8
    E, EH, H, O = 16, 16, 32, 24          # emb_dim, enc_hid_dim, dec_hid_dim, output_size
    n_labels = O

    kp, k1, k2, k3 = jax.random.split(key, 4)
    params = make_params(kp, n_labels, E, EH, H, O)
    prep = prepare_params(params)
    input_ids = jax.random.randint(k1, (B,), 0, n_labels, dtype=jnp.int32)
    hidden = jax.random.normal(k2, (B, H), jnp.float32)
    encoder_outputs = jax.random.normal(k3, (S, B, 2 * EH), jnp.float32)

    pred, h_new = decoder_attention(prep, input_ids, hidden, encoder_outputs)
    jax.block_until_ready((pred, h_new))
    assert pred.shape == (B, O) and h_new.shape == (B, H)

    # Tight check vs a reference using the same bf16-operand / f32-accum policy.
    pred_m, h_m = reference(params, input_ids, hidden, encoder_outputs,
                            mxu_dtype=jnp.bfloat16)
    assert jnp.allclose(pred, pred_m, atol=2e-3, rtol=2e-3), \
        float(jnp.max(jnp.abs(pred - pred_m)))
    assert jnp.allclose(h_new, h_m, atol=2e-3, rtol=2e-3), \
        float(jnp.max(jnp.abs(h_new - h_m)))

    # Loose check vs exact f32 (torch) semantics — difference is bounded by the
    # bf16 rounding of MXU operands / stored activations (nonlinear math stays f32).
    pred_r, h_r = reference(params, input_ids, hidden, encoder_outputs)
    assert jnp.allclose(pred, pred_r, atol=5e-2, rtol=5e-2)
    assert jnp.allclose(h_new, h_r, atol=5e-2, rtol=5e-2)

    print("KERNEL_OK")
</pallas_src>

<mosaic_0001>
module attributes {stable_mosaic.version = 11 : i64} {
  func.func @_enc_proj_kernel(%arg0: i32, %arg1: i32, %arg2: memref<16x8x128xbf16, #tpu.memory_space<vmem>>, %arg3: memref<128x128xbf16, #tpu.memory_space<vmem>>, %arg4: memref<1x128xf32, #tpu.memory_space<vmem>>, %arg5: memref<16x8x128xbf16, #tpu.memory_space<vmem>>) attributes {dimension_semantics = [#tpu.dimension_semantics<parallel>, #tpu.dimension_semantics<parallel>], iteration_bounds = array<i64: 1, 1>, scalar_prefetch = 0 : i64, scratch_operands = 0 : i64, tpu.core_type = #tpu.core_type<tc>, window_params = [{transform_indices = @transform_0, window_bounds = array<i64: 16, 8, 128>}, {pipeline_mode = #tpu.pipeline_mode<synchronous>, transform_indices = @transform_1, window_bounds = array<i64: 128, 128>}, {pipeline_mode = #tpu.pipeline_mode<synchronous>, transform_indices = @transform_2, window_bounds = array<i64: 1, 128>}, {transform_indices = @transform_3, window_bounds = array<i64: 16, 8, 128>}]} {
    %c0 = arith.constant 0 : index
    %c0_0 = arith.constant 0 : index
    %c0_1 = arith.constant 0 : index
    %0 = vector.load %arg2[%c0, %c0_0, %c0_1] : memref<16x8x128xbf16, #tpu.memory_space<vmem>>, vector<16x8x128xbf16>
    %1 = vector.shape_cast %0 : vector<16x8x128xbf16> to vector<128x128xbf16>
    %c0_2 = arith.constant 0 : index
    %c0_3 = arith.constant 0 : index
    %2 = vector.load %arg3[%c0_2, %c0_3] : memref<128x128xbf16, #tpu.memory_space<vmem>>, vector<128x128xbf16>
    %cst = arith.constant dense<0.000000e+00> : vector<128x128xf32>
    %3 = tpu.matmul %1, %2, %cst {dimension_numbers = #tpu.dot_dimension_numbers<[1], [0], [0], [1], [0, 0, 1, 1], [], []>} : vector<128x128xbf16>, vector<128x128xbf16>, vector<128x128xf32> -> vector<128x128xf32>
    %c0_4 = arith.constant 0 : index
    %c0_5 = arith.constant 0 : index
    %4 = vector.load %arg4[%c0_4, %c0_5] : memref<1x128xf32, #tpu.memory_space<vmem>>, vector<1x128xf32>
    %5 = vector.broadcast %4 : vector<1x128xf32> to vector<128x128xf32>
    %6 = arith.addf %3, %5 : vector<128x128xf32>
    %7 = vector.shape_cast %6 : vector<128x128xf32> to vector<16x8x128xf32>
    %8 = arith.truncf %7 : vector<16x8x128xf32> to vector<16x8x128xbf16>
    %c0_6 = arith.constant 0 : index
    %c0_7 = arith.constant 0 : index
    %c0_8 = arith.constant 0 : index
    %9 = vector.load %arg5[%c0_6, %c0_7, %c0_8] : memref<16x8x128xbf16, #tpu.memory_space<vmem>>, vector<16x8x128xbf16>
    tpu.vector_store %arg5[%c0_6, %c0_7, %c0_8], %8 {strides = array<i32>} : memref<16x8x128xbf16, #tpu.memory_space<vmem>>, vector<16x8x128xbf16>,
    return
  }
  func.func @transform_0(%arg0: i32, %arg1: i32) -> (i32, i32, i32) {
    %c0_i32 = arith.constant 0 : i32
    %c0_i32_0 = arith.constant 0 : i32
    return %arg0, %arg1, %c0_i32 : i32, i32, i32
  }
  func.func @transform_1(%arg0: i32, %arg1: i32) -> (i32, i32) {
    %c0_i32 = arith.constant 0 : i32
    %c0_i32_0 = arith.constant 0 : i32
    %c0_i32_1 = arith.constant 0 : i32
    return %c0_i32, %c0_i32_0 : i32, i32
  }
  func.func @transform_2(%arg0: i32, %arg1: i32) -> (i32, i32) {
    %c0_i32 = arith.constant 0 : i32
    %c0_i32_0 = arith.constant 0 : i32
    %c0_i32_1 = arith.constant 0 : i32
    return %c0_i32, %c0_i32_0 : i32, i32
  }
  func.func @transform_3(%arg0: i32, %arg1: i32) -> (i32, i32, i32) {
    %c0_i32 = arith.constant 0 : i32
    %c0_i32_0 = arith.constant 0 : i32
    return %arg0, %arg1, %c0_i32 : i32, i32, i32
  }
}

</mosaic_0001>

<llo_original>
// kernel: tpu_custom_call.1
$region0: #{tpu_custom_call.1}
  #allocation0 [shape = 'u32[]', space=smem, size = 0x4, offset = 0x4, fixed_abs, tag = 'smem constant byte address 0x4 - core index']
  #allocation1 [shape = 'u32[72,128]{1,0:T(1,128)}', space=vmem, size = 0x9000, scoped, tag = 'internal scratch']
  %s0 = inlined_call_operand.hbm [shape: bf16[16,8,128], index: 0, kind: input, shape index: {}]
  %s1 = inlined_call_operand.hbm [shape: bf16[128,128], index: 1, kind: input, shape index: {}]
  %s2 = inlined_call_operand.vmem [shape: f32[1,128], index: 2, kind: input, shape index: {}]
  %s3 = inlined_call_operand.hbm [shape: bf16[16,8,128], index: 3, kind: output, shape index: {}]
  %s4 = sld [smem:[#allocation0]]
  $region30: #{tpu_custom_call.1} parent=0
    _
  %s6 = ssub.s32 1, %s4
  %s7 = scalar_select 0, %s6, %s4
  $region1: #{tpu_custom_call.1} parent=0
    #allocation2 [shape = 'u8[32768]{0}', space=vmem, size = 0x8000, scoped, tag = 'input window, operand 0, single buffered']
    #allocation3 [shape = 's32[1]{0}', space=sflag, size = 0x4, scoped, tag = 'scoped memory for tpu_custom_call.1']
    #allocation4 [shape = 's32[1]{0}', space=sflag, size = 0x4, scoped, tag = 'scoped memory for tpu_custom_call.1']
    #allocation5 [shape = 'u8[32768]{0}', space=vmem, size = 0x8000, scoped, tag = 'input window, operand 1, single buffered']
    #allocation6 [shape = 's32[1]{0}', space=sflag, size = 0x4, scoped, tag = 'scoped memory for tpu_custom_call.1']
    #allocation7 [shape = 'u8[32768]{0}', space=vmem, size = 0x8000, scoped, tag = 'output window, operand 0, single buffered']
    %8 = vsyncpa [#allocation3], 0
    %9 = vsyncpa [#allocation6], 0
    %10 = vsyncpa [#allocation4], 0
    // Predicated region
    $region2: #{tpu_custom_call.1} parent=1 // pred_check
      _
    $region3: #{tpu_custom_call.1} parent=1 // pred_check_branch
      %12 = sbr.rel (0) target = $region5
    $region4: #{tpu_custom_call.1} parent=1 // pred_region
      %14 = vsyncadd [#allocation3], 0
      %s15 = sshll.u32 %s0, 4
      %s16 = int_to_ptr.hbm [resolvable:$true] %s15
      %s17 = sshll.u32 [#allocation2], 4
      %s18 = int_to_ptr.vmem [resolvable:$true] %s17
      %23 = dma.hbm_to_vmem [thread:$0]  %s16, 1024, %s18, [#allocation3], 64, 64, 4
    $region5: #{tpu_custom_call.1} parent=1 // pred_fallthru
      _
    // Predicated region
    $region6: #{tpu_custom_call.1} parent=1 // pred_check
      _
    $region7: #{tpu_custom_call.1} parent=1 // pred_check_branch
      %25 = sbr.rel (0) target = $region9
    $region8: #{tpu_custom_call.1} parent=1 // pred_region
      %27 = vsyncadd [#allocation6], 0
      %s28 = sshll.u32 %s1, 4
      %s29 = int_to_ptr.hbm [resolvable:$true] %s28
      %s30 = sshll.u32 [#allocation5], 4
      %s31 = int_to_ptr.vmem [resolvable:$true] %s30
      %36 = dma.hbm_to_vmem [thread:$0]  %s29, 1024, %s31, [#allocation6], 64, 64, 4
    $region9: #{tpu_custom_call.1} parent=1 // pred_fallthru
      _
    // Predicated region
    $region10: #{tpu_custom_call.1} parent=1 // pred_check
      _
    $region11: #{tpu_custom_call.1} parent=1 // pred_check_branch
      %38 = sbr.rel (0) target = $region13
    $region12: #{tpu_custom_call.1} parent=1 // pred_region
      _
    $region13: #{tpu_custom_call.1} parent=1 // pred_fallthru
      _
    // Predicated region
    $region14: #{tpu_custom_call.1} parent=1 // pred_check
      _
    $region15: #{tpu_custom_call.1} parent=1 // pred_check_branch
      %40 = sbr.rel (0) target = $region17
    $region16: #{tpu_custom_call.1} parent=1 // pred_region
      %42 = dma.done [#allocation3], 1024
    $region17: #{tpu_custom_call.1} parent=1 // pred_fallthru
      _
    // Predicated region
    $region18: #{tpu_custom_call.1} parent=1 // pred_check
      _
    $region19: #{tpu_custom_call.1} parent=1 // pred_check_branch
      %44 = sbr.rel (0) target = $region21
    $region20: #{tpu_custom_call.1} parent=1 // pred_region
      %46 = dma.done [#allocation6], 1024
    $region21: #{tpu_custom_call.1} parent=1 // pred_fallthru
      _
    %v47 = vld [vmem:[#allocation2] sm:$0xf]
    %v48 = vld [vmem:[#allocation2 + $0x4] sm:$0xf]
    %v49 = vld [vmem:[#allocation2 + $0x8] sm:$0xf]
    %v50 = vld [vmem:[#allocation2 + $0xc] sm:$0xf]
    %v51 = vld [vmem:[#allocation2 + $0x10] sm:$0xf]
    %v52 = vld [vmem:[#allocation2 + $0x14] sm:$0xf]
    %v53 = vld [vmem:[#allocation2 + $0x18] sm:$0xf]
    %v54 = vld [vmem:[#allocation2 + $0x1c] sm:$0xf]
    %v55 = vld [vmem:[#allocation2 + $0x20] sm:$0xf]
    %v56 = vld [vmem:[#allocation2 + $0x24] sm:$0xf]
    %v57 = vld [vmem:[#allocation2 + $0x28] sm:$0xf]
    %v58 = vld [vmem:[#allocation2 + $0x2c] sm:$0xf]
    %v59 = vld [vmem:[#allocation2 + $0x30] sm:$0xf]
    %v60 = vld [vmem:[#allocation2 + $0x34] sm:$0xf]
    %v61 = vld [vmem:[#allocation2 + $0x38] sm:$0xf]
    %v62 = vld [vmem:[#allocation2 + $0x3c] sm:$0xf]
    %v63 = vld [vmem:[#allocation5] sm:$0xf]
    %v64 = vld [vmem:[#allocation5 + $0x4] sm:$0xf]
    %v65 = vld [vmem:[#allocation5 + $0x8] sm:$0xf]
    %v66 = vld [vmem:[#allocation5 + $0xc] sm:$0xf]
    %v67 = vld [vmem:[#allocation5 + $0x10] sm:$0xf]
    %v68 = vld [vmem:[#allocation5 + $0x14] sm:$0xf]
    %v69 = vld [vmem:[#allocation5 + $0x18] sm:$0xf]
    %v70 = vld [vmem:[#allocation5 + $0x1c] sm:$0xf]
    %v71 = vld [vmem:[#allocation5 + $0x20] sm:$0xf]
    %v72 = vld [vmem:[#allocation5 + $0x24] sm:$0xf]
    %v73 = vld [vmem:[#allocation5 + $0x28] sm:$0xf]
    %v74 = vld [vmem:[#allocation5 + $0x2c] sm:$0xf]
    %v75 = vld [vmem:[#allocation5 + $0x30] sm:$0xf]
    %v76 = vld [vmem:[#allocation5 + $0x34] sm:$0xf]
    %v77 = vld [vmem:[#allocation5 + $0x38] sm:$0xf]
    %v78 = vld [vmem:[#allocation5 + $0x3c] sm:$0xf]
    %v79 = vld [vmem:[%s2] sm:$0x1]
    %v81 = vperm.slane %v79, 0
    %v99 = vunpack.c.l.b16 %v47
    %v100 = vunpack.c.l.b16 %v48
    %v101 = vunpack.c.l.b16 %v49
    %v102 = vunpack.c.l.b16 %v50
    %v103 = vunpack.c.l.b16 %v51
    %v104 = vunpack.c.l.b16 %v52
    %v105 = vunpack.c.l.b16 %v53
    %v106 = vunpack.c.l.b16 %v54
    %v107 = vunpack.c.l.b16 %v55
    %v108 = vunpack.c.l.b16 %v56
    %v109 = vunpack.c.l.b16 %v57
    %v110 = vunpack.c.l.b16 %v58
    %v111 = vunpack.c.l.b16 %v59
    %v112 = vunpack.c.l.b16 %v60
    %v113 = vunpack.c.l.b16 %v61
    %v114 = vunpack.c.l.b16 %v62
    %v115 = vpack.c.b16 %v100, %v99
    %v116 = vpack.c.b16 %v102, %v101
    %v117 = vpack.c.b16 %v104, %v103
    %v118 = vpack.c.b16 %v106, %v105
    %v119 = vpack.c.b16 %v108, %v107
    %v120 = vpack.c.b16 %v110, %v109
    %v121 = vpack.c.b16 %v112, %v111
    %v122 = vpack.c.b16 %v114, %v113
    %v147 = vunpack.c.l.b16 %v63
    %v148 = vunpack.c.l.b16 %v64
    %v149 = vunpack.c.l.b16 %v65
    %v150 = vunpack.c.l.b16 %v66
    %v151 = vunpack.c.l.b16 %v67
    %v152 = vunpack.c.l.b16 %v68
    %v153 = vunpack.c.l.b16 %v69
    %v154 = vunpack.c.l.b16 %v70
    %v155 = vunpack.c.l.b16 %v71
    %v156 = vunpack.c.l.b16 %v72
    %v157 = vunpack.c.l.b16 %v73
    %v158 = vunpack.c.l.b16 %v74
    %v159 = vunpack.c.l.b16 %v75
    %v160 = vunpack.c.l.b16 %v76
    %v161 = vunpack.c.l.b16 %v77
    %v162 = vunpack.c.l.b16 %v78
    %v163 = vpack.c.b16 %v148, %v147
    %v164 = vpack.c.b16 %v150, %v149
    %v165 = vpack.c.b16 %v152, %v151
    %v166 = vpack.c.b16 %v154, %v153
    %v167 = vpack.c.b16 %v156, %v155
    %v168 = vpack.c.b16 %v158, %v157
    %v169 = vpack.c.b16 %v160, %v159
    %v170 = vpack.c.b16 %v162, %v161
    %179 = vmatpush.bf16.msra.mxu0 %v170
    %180 = vmatpush.bf16.msra.mxu0 %v169
    %181 = vmatpush.bf16.msra.mxu0 %v168
    %182 = vmatpush.bf16.msra.mxu0 %v167
    %183 = vmatpush.bf16.msra.mxu0 %v166
    %184 = vmatpush.bf16.msra.mxu0 %v165
    %185 = vmatpush.bf16.msra.mxu0 %v164
    %186 = vmatpush.bf16.msra.mxu0 %v163
    %187 = vmatmul.bf16.gmra.mxu0 %v115
    %v188 = vpop.f32.mrf.mxu0
    %v189 = vadd.f32 %v81, %v188
    %v190 = vpop.f32.mrf.mxu0
    %v191 = vadd.f32 %v81, %v190
    %192 = vmatmul.bf16.gmra.mxu0 %v116
    %v193 = vpop.f32.mrf.mxu0
    %v194 = vadd.f32 %v81, %v193
    %v195 = vpop.f32.mrf.mxu0
    %v196 = vadd.f32 %v81, %v195
    %197 = vmatmul.bf16.gmra.mxu0 %v117
    %v198 = vpop.f32.mrf.mxu0
    %v199 = vadd.f32 %v81, %v198
    %v200 = vpop.f32.mrf.mxu0
    %v201 = vadd.f32 %v81, %v200
    %202 = vmatmul.bf16.gmra.mxu0 %v118
    %v203 = vpop.f32.mrf.mxu0
    %v204 = vadd.f32 %v81, %v203
    %v205 = vpop.f32.mrf.mxu0
    %v206 = vadd.f32 %v81, %v205
    %207 = vmatmul.bf16.gmra.mxu0 %v119
    %v208 = vpop.f32.mrf.mxu0
    %v209 = vadd.f32 %v81, %v208
    %v210 = vpop.f32.mrf.mxu0
    %v211 = vadd.f32 %v81, %v210
    %212 = vmatmul.bf16.gmra.mxu0 %v120
    %v213 = vpop.f32.mrf.mxu0
    %v214 = vadd.f32 %v81, %v213
    %v215 = vpop.f32.mrf.mxu0
    %v216 = vadd.f32 %v81, %v215
    %217 = vmatmul.bf16.gmra.mxu0 %v121
    %v218 = vpop.f32.mrf.mxu0
    %v219 = vadd.f32 %v81, %v218
    %v220 = vpop.f32.mrf.mxu0
    %v221 = vadd.f32 %v81, %v220
    %222 = vmatmul.bf16.gmra.mxu0 %v122
    %v223 = vpop.f32.mrf.mxu0
    %v224 = vadd.f32 %v81, %v223
    %v225 = vpop.f32.mrf.mxu0
    %v226 = vadd.f32 %v81, %v225
    %227 = vdwg.mxu0
    %v228 = vpack.c.bf16 %v189, %v189
    %v229 = vpack.c.bf16 %v191, %v191
    %v230 = vpack.c.bf16 %v194, %v194
    %v231 = vpack.c.bf16 %v196, %v196
    %v232 = vpack.c.bf16 %v199, %v199
    %v233 = vpack.c.bf16 %v201, %v201
    %v234 = vpack.c.bf16 %v204, %v204
    %v235 = vpack.c.bf16 %v206, %v206
    %v236 = vpack.c.bf16 %v209, %v209
    %v237 = vpack.c.bf16 %v211, %v211
    %v238 = vpack.c.bf16 %v214, %v214
    %v239 = vpack.c.bf16 %v216, %v216
    %v240 = vpack.c.bf16 %v219, %v219
    %v241 = vpack.c.bf16 %v221, %v221
    %v242 = vpack.c.bf16 %v224, %v224
    %v243 = vpack.c.bf16 %v226, %v226
    %244 = vst [vmem:[#allocation7] sm:$0xf] %v228
    %245 = vst [vmem:[#allocation7 + $0x4] sm:$0xf] %v229
    %246 = vst [vmem:[#allocation7 + $0x8] sm:$0xf] %v230
    %247 = vst [vmem:[#allocation7 + $0xc] sm:$0xf] %v231
    %248 = vst [vmem:[#allocation7 + $0x10] sm:$0xf] %v232
    %249 = vst [vmem:[#allocation7 + $0x14] sm:$0xf] %v233
    %250 = vst [vmem:[#allocation7 + $0x18] sm:$0xf] %v234
    %251 = vst [vmem:[#allocation7 + $0x1c] sm:$0xf] %v235
    %252 = vst [vmem:[#allocation7 + $0x20] sm:$0xf] %v236
    %253 = vst [vmem:[#allocation7 + $0x24] sm:$0xf] %v237
    %254 = vst [vmem:[#allocation7 + $0x28] sm:$0xf] %v238
    %255 = vst [vmem:[#allocation7 + $0x2c] sm:$0xf] %v239
    %256 = vst [vmem:[#allocation7 + $0x30] sm:$0xf] %v240
    %257 = vst [vmem:[#allocation7 + $0x34] sm:$0xf] %v241
    %258 = vst [vmem:[#allocation7 + $0x38] sm:$0xf] %v242
    %259 = vst [vmem:[#allocation7 + $0x3c] sm:$0xf] %v243
    // Predicated region
    $region22: #{tpu_custom_call.1} parent=1 // pred_check
      _
    $region23: #{tpu_custom_call.1} parent=1 // pred_check_branch
      %261 = sbr.rel (0) target = $region25
    $region24: #{tpu_custom_call.1} parent=1 // pred_region
      %263 = vsyncadd [#allocation4], 0
      %s264 = sshll.u32 [#allocation7], 4
      %s265 = int_to_ptr.vmem [resolvable:$true] %s264
      %s266 = sshll.u32 %s3, 4
      %s267 = int_to_ptr.hbm [resolvable:$true] %s266
      %272 = dma.vmem_to_hbm [thread:$0]  %s265, 1024, %s267, [#allocation4], 64, 64, 4
    $region25: #{tpu_custom_call.1} parent=1 // pred_fallthru
      _
    // Predicated region
    $region26: #{tpu_custom_call.1} parent=1 // pred_check
      _
    $region27: #{tpu_custom_call.1} parent=1 // pred_check_branch
      %274 = sbr.rel (0) target = $region29
    $region28: #{tpu_custom_call.1} parent=1 // pred_region
      %276 = dma.done [#allocation4], 1024
    $region29: #{tpu_custom_call.1} parent=1 // pred_fallthru
      _
    %277 = vsyncpa [#allocation3], 1
    %278 = vsyncpa [#allocation6], 1
    %279 = vsyncpa [#allocation4], 1

</llo_original>
